<compile_context>
chip_gen: v5e
topology: v5e:2x2
jax: 0.10.0
libtpu: 0.0.40
codegen_flags: <defaults>
</compile_context>

<pallas_src>
import functools

import jax
import jax.numpy as jnp
from jax.experimental import pallas as pl
from jax.experimental.pallas import tpu as pltpu

LANE = 128          # lane tile (last dim)
SUB = 8             # sublane tile
BLOCK_ROWS = 2048   # rows of 128 lanes per block -> 1 MiB f32 per input per buffer
NUM_SHARDS = 2      # leading "parallel" grid axis (dual-TC on v7x; harmless on v5e/v6e)


def _cdiv(a, b):
    return -(-a // b)


def _focal_sum_kernel(x_ref, y_ref, out_ref, *, alpha, gamma, n,
                      tiles_per_shard, block_rows, apply_mask):
    """Accumulates per-shard (8,128) partial sums of the per-element focal loss."""
    s = pl.program_id(0)   # shard (parallel)
    t = pl.program_id(1)   # tile within shard (arbitrary / reduction)

    @pl.when(t == 0)
    def _():
        out_ref[...] = jnp.zeros_like(out_ref)

    # Stream native dtype from HBM, upcast once in-register (module does .float()).
    x = x_ref[...].astype(jnp.float32)
    y = y_ref[...].astype(jnp.float32)

    # One exp serves both the sigmoid and the stable BCE softplus term.
    e = jnp.exp(-jnp.abs(x))                        # EUP
    inv1pe = 1.0 / (1.0 + e)                        # sigmoid(|x|)
    p = jnp.where(x >= 0.0, inv1pe, e * inv1pe)     # sigmoid(x)

    is_pos = y == 1.0
    alpha_t = jnp.where(is_pos, alpha, 1.0 - alpha)
    pt = jnp.where(is_pos, p, 1.0 - p)

    # Numerically stable BCEWithLogitsLoss(reduction='none'):
    #   max(x, 0) - x*y + log(1 + exp(-|x|))
    ce = jnp.maximum(x, 0.0) - x * y + jnp.log(1.0 + e)   # EUP (log)

    if gamma == 2.0:
        mod = jnp.square(1.0 - pt)
    elif gamma == 1.0:
        mod = 1.0 - pt
    elif gamma == 0.0:
        mod = jnp.ones_like(pt)
    else:
        mod = jnp.power(1.0 - pt, gamma)

    loss = alpha_t * mod * ce

    if apply_mask:
        # Mask tail / duplicated (clamped) / partial-edge blocks.  Compare the
        # block-local linear index against a scalar limit (valid count in this block).
        block_linear = s * tiles_per_shard + t
        lim = n - block_linear * (block_rows * LANE)        # traced scalar
        row = jax.lax.broadcasted_iota(jnp.int32, (block_rows, LANE), 0)
        col = jax.lax.broadcasted_iota(jnp.int32, (block_rows, LANE), 1)
        loss = jnp.where(row * LANE + col < lim, loss, 0.0)

    # Reduce the whole block to one (8,128) partial (pure VPU vreg adds; layout-trivial
    # reshape), then a single accumulate into the resident output block.
    out_ref[...] += loss.reshape(1, block_rows // SUB, SUB, LANE).sum(axis=1)


def focal_loss_v1(logits, label, *, alpha=0.25, gamma=2.0, reduction="mean",
                  block_rows=BLOCK_ROWS, num_shards=NUM_SHARDS):
    """Pallas implementation of FocalLossV1.forward(logits, label) -> scalar."""
    if reduction not in ("mean", "sum"):
        # TODO(synk): reduction='none' (per-element output) not implemented in-kernel.
        raise NotImplementedError("reduction must be 'mean' or 'sum'")

    n = int(logits.size)
    x = logits.reshape(-1)
    y = label.reshape(-1)

    unit = SUB * LANE  # 1024
    pad = (-n) % unit
    if pad:
        # TODO(synk): fallback copy; the zero-copy path requires numel % 1024 == 0
        # (true for typical NCHW segmentation shapes). Padded zeros are masked in-kernel.
        x = jnp.pad(x, (0, pad))
        y = jnp.pad(y, (0, pad))
    n_rows = (n + pad) // LANE           # multiple of 8
    x2 = x.reshape(n_rows, LANE)         # zero-copy reshape when pad == 0
    y2 = y.reshape(n_rows, LANE)

    brows = min(block_rows, n_rows)      # both multiples of 8
    tiles_total = _cdiv(n_rows, brows)
    shards = min(num_shards, tiles_total)
    tiles_per_shard = _cdiv(tiles_total, shards)
    covered = shards * tiles_per_shard * brows * LANE
    apply_mask = covered != n

    kernel = functools.partial(
        _focal_sum_kernel,
        alpha=float(alpha), gamma=float(gamma), n=n,
        tiles_per_shard=int(tiles_per_shard), block_rows=int(brows),
        apply_mask=bool(apply_mask))

    def in_map(s, t):
        # Clamp so the DMA block index is always valid; over-covered blocks are
        # fully masked in-kernel (their unclamped global indices are >= n).
        return (jnp.minimum(s * tiles_per_shard + t, tiles_total - 1), 0)

    partials = pl.pallas_call(
        kernel,
        out_shape=jax.ShapeDtypeStruct((shards, SUB, LANE), jnp.float32),
        grid_spec=pltpu.PrefetchScalarGridSpec(
            num_scalar_prefetch=0,
            grid=(shards, tiles_per_shard),
            in_specs=[
                pl.BlockSpec((brows, LANE), in_map),
                pl.BlockSpec((brows, LANE), in_map),
            ],
            out_specs=pl.BlockSpec((1, SUB, LANE), lambda s, t: (s, 0, 0)),
        ),
        compiler_params=pltpu.CompilerParams(
            dimension_semantics=("parallel", "arbitrary")),
    )(x2, y2)

    total = jnp.sum(partials)
    if reduction == "mean":
        return total / jnp.float32(n)
    return total


def focal_loss_v1_ref(logits, label, *, alpha=0.25, gamma=2.0, reduction="mean"):
    """Pure-JAX reference matching the PyTorch FocalLossV1 forward."""
    x = logits.astype(jnp.float32)
    y = label.astype(jnp.float32)
    p = jax.nn.sigmoid(x)
    alpha_t = jnp.where(y == 1.0, alpha, 1.0 - alpha)
    pt = jnp.where(y == 1.0, p, 1.0 - p)
    ce = -(y * jax.nn.log_sigmoid(x) + (1.0 - y) * jax.nn.log_sigmoid(-x))
    loss = alpha_t * (1.0 - pt) ** gamma * ce
    if reduction == "mean":
        return loss.mean()
    if reduction == "sum":
        return loss.sum()
    return loss


if __name__ == "__main__":
    key = jax.random.PRNGKey(0)
    k1, k2, k3, k4 = jax.random.split(key, 4)

    # logits (N, C, H, W); binary label mask of same shape.
    logits = jax.random.normal(k1, (2, 4, 16, 16), dtype=jnp.float32) * 3.0
    label = (jax.random.uniform(k2, (2, 4, 16, 16)) > 0.5).astype(jnp.float32)

    loss = focal_loss_v1(logits, label)
    jax.block_until_ready(loss)
    ref = focal_loss_v1_ref(logits, label)
    assert jnp.allclose(loss, ref, atol=1e-5, rtol=1e-5), (loss, ref)

    # Second check exercising the tail-masking path (numel not a multiple of 1024).
    logits2 = jax.random.normal(k3, (2, 3, 17, 11), dtype=jnp.float32)
    label2 = (jax.random.uniform(k4, (2, 3, 17, 11)) > 0.5).astype(jnp.float32)
    loss2 = focal_loss_v1(logits2, label2)
    jax.block_until_ready(loss2)
    ref2 = focal_loss_v1_ref(logits2, label2)
    assert jnp.allclose(loss2, ref2, atol=1e-5, rtol=1e-5), (loss2, ref2)

    # Third check: native bf16 logits streamed without a host-side upcast.
    logits3 = (jax.random.normal(k1, (2, 4, 16, 16)) * 3.0).astype(jnp.bfloat16)
    loss3 = focal_loss_v1(logits3, label, reduction="sum")
    jax.block_until_ready(loss3)
    ref3 = focal_loss_v1_ref(logits3, label, reduction="sum")
    assert jnp.allclose(loss3, ref3, atol=1e-4, rtol=1e-5), (loss3, ref3)

    print("KERNEL_OK")
</pallas_src>

<mosaic_0001>
module attributes {stable_mosaic.version = 11 : i64} {
  func.func @_focal_sum_kernel(%arg0: i32, %arg1: i32, %arg2: memref<16x128xf32, #tpu.memory_space<vmem>>, %arg3: memref<16x128xf32, #tpu.memory_space<vmem>>, %arg4: memref<1x8x128xf32, #tpu.memory_space<vmem>>) attributes {dimension_semantics = [#tpu.dimension_semantics<parallel>, #tpu.dimension_semantics<arbitrary>], iteration_bounds = array<i64: 1, 1>, scalar_prefetch = 0 : i64, scratch_operands = 0 : i64, tpu.core_type = #tpu.core_type<tc>, window_params = [{transform_indices = @transform_0, window_bounds = array<i64: 16, 128>}, {transform_indices = @transform_1, window_bounds = array<i64: 16, 128>}, {transform_indices = @transform_2, window_bounds = array<i64: 1, 8, 128>}]} {
    %c0_i32 = arith.constant 0 : i32
    %0 = arith.cmpi eq, %arg1, %c0_i32 : i32
    %1 = arith.extui %0 : i1 to i32
    %c0_i32_0 = arith.constant 0 : i32
    %2 = arith.cmpi ne, %1, %c0_i32_0 : i32
    scf.if %2 {
      %cst_21 = arith.constant 0.000000e+00 : f32
      %43 = vector.broadcast %cst_21 : f32 to vector<1x8x128xf32>
      %c0_22 = arith.constant 0 : index
      %c0_23 = arith.constant 0 : index
      %c0_24 = arith.constant 0 : index
      %44 = vector.load %arg4[%c0_22, %c0_23, %c0_24] : memref<1x8x128xf32, #tpu.memory_space<vmem>>, vector<1x8x128xf32>
      tpu.vector_store %arg4[%c0_22, %c0_23, %c0_24], %43 {strides = array<i32>} : memref<1x8x128xf32, #tpu.memory_space<vmem>>, vector<1x8x128xf32>,
    } else {
    }
    %c0 = arith.constant 0 : index
    %c0_1 = arith.constant 0 : index
    %3 = vector.load %arg2[%c0, %c0_1] : memref<16x128xf32, #tpu.memory_space<vmem>>, vector<16x128xf32>
    %c0_2 = arith.constant 0 : index
    %c0_3 = arith.constant 0 : index
    %4 = vector.load %arg3[%c0_2, %c0_3] : memref<16x128xf32, #tpu.memory_space<vmem>>, vector<16x128xf32>
    %5 = math.absf %3 : vector<16x128xf32>
    %cst = arith.constant 0.000000e+00 : f32
    %6 = vector.broadcast %cst : f32 to vector<16x128xf32>
    %7 = arith.subf %6, %5 : vector<16x128xf32>
    %8 = math.exp %7 : vector<16x128xf32>
    %cst_4 = arith.constant 1.000000e+00 : f32
    %9 = vector.broadcast %cst_4 : f32 to vector<16x128xf32>
    %10 = arith.addf %9, %8 : vector<16x128xf32>
    %cst_5 = arith.constant 1.000000e+00 : f32
    %11 = vector.broadcast %cst_5 : f32 to vector<16x128xf32>
    %12 = arith.divf %11, %10 : vector<16x128xf32>
    %cst_6 = arith.constant 0.000000e+00 : f32
    %13 = vector.broadcast %cst_6 : f32 to vector<16x128xf32>
    %14 = arith.cmpf oge, %3, %13 : vector<16x128xf32>
    %15 = arith.mulf %8, %12 : vector<16x128xf32>
    %16 = arith.select %14, %12, %15 : vector<16x128xi1>, vector<16x128xf32>
    %cst_7 = arith.constant 1.000000e+00 : f32
    %17 = vector.broadcast %cst_7 : f32 to vector<16x128xf32>
    %18 = arith.cmpf oeq, %4, %17 : vector<16x128xf32>
    %cst_8 = arith.constant 2.500000e-01 : f32
    %cst_9 = arith.constant 7.500000e-01 : f32
    %19 = vector.broadcast %cst_8 : f32 to vector<16x128xf32>
    %20 = vector.broadcast %cst_9 : f32 to vector<16x128xf32>
    %21 = arith.select %18, %19, %20 : vector<16x128xi1>, vector<16x128xf32>
    %cst_10 = arith.constant 1.000000e+00 : f32
    %22 = vector.broadcast %cst_10 : f32 to vector<16x128xf32>
    %23 = arith.subf %22, %16 : vector<16x128xf32>
    %24 = arith.select %18, %16, %23 : vector<16x128xi1>, vector<16x128xf32>
    %cst_11 = arith.constant 0.000000e+00 : f32
    %25 = vector.broadcast %cst_11 : f32 to vector<16x128xf32>
    %26 = arith.maximumf %3, %25 : vector<16x128xf32>
    %27 = arith.mulf %3, %4 : vector<16x128xf32>
    %28 = arith.subf %26, %27 : vector<16x128xf32>
    %cst_12 = arith.constant 1.000000e+00 : f32
    %29 = vector.broadcast %cst_12 : f32 to vector<16x128xf32>
    %30 = arith.addf %29, %8 : vector<16x128xf32>
    %31 = math.log %30 : vector<16x128xf32>
    %32 = arith.addf %28, %31 : vector<16x128xf32>
    %cst_13 = arith.constant 1.000000e+00 : f32
    %33 = vector.broadcast %cst_13 : f32 to vector<16x128xf32>
    %34 = arith.subf %33, %24 : vector<16x128xf32>
    %35 = arith.mulf %34, %34 : vector<16x128xf32>
    %36 = arith.mulf %21, %35 : vector<16x128xf32>
    %37 = arith.mulf %36, %32 : vector<16x128xf32>
    %c0_14 = arith.constant 0 : index
    %c0_15 = arith.constant 0 : index
    %c0_16 = arith.constant 0 : index
    %38 = vector.load %arg4[%c0_14, %c0_15, %c0_16] : memref<1x8x128xf32, #tpu.memory_space<vmem>>, vector<1x8x128xf32>
    %39 = vector.shape_cast %37 : vector<16x128xf32> to vector<1x2x8x128xf32>
    %cst_17 = arith.constant dense<0.000000e+00> : vector<1x8x128xf32>
    %40 = vector.multi_reduction <add>, %39, %cst_17 [1] : vector<1x2x8x128xf32> to vector<1x8x128xf32>
    %41 = arith.addf %38, %40 : vector<1x8x128xf32>
    %c0_18 = arith.constant 0 : index
    %c0_19 = arith.constant 0 : index
    %c0_20 = arith.constant 0 : index
    %42 = vector.load %arg4[%c0_18, %c0_19, %c0_20] : memref<1x8x128xf32, #tpu.memory_space<vmem>>, vector<1x8x128xf32>
    tpu.vector_store %arg4[%c0_18, %c0_19, %c0_20], %41 {strides = array<i32>} : memref<1x8x128xf32, #tpu.memory_space<vmem>>, vector<1x8x128xf32>,
    return
  }
  func.func @transform_0(%arg0: i32, %arg1: i32) -> (i32, i32) {
    %c1_i32 = arith.constant 1 : i32
    %0 = arith.muli %arg0, %c1_i32 : i32
    %1 = arith.addi %0, %arg1 : i32
    %c0_i32 = arith.constant 0 : i32
    %2 = arith.minsi %1, %c0_i32 : i32
    %c0_i32_0 = arith.constant 0 : i32
    %c0_i32_1 = arith.constant 0 : i32
    return %2, %c0_i32_0 : i32, i32
  }
  func.func @transform_1(%arg0: i32, %arg1: i32) -> (i32, i32) {
    %c1_i32 = arith.constant 1 : i32
    %0 = arith.muli %arg0, %c1_i32 : i32
    %1 = arith.addi %0, %arg1 : i32
    %c0_i32 = arith.constant 0 : i32
    %2 = arith.minsi %1, %c0_i32 : i32
    %c0_i32_0 = arith.constant 0 : i32
    %c0_i32_1 = arith.constant 0 : i32
    return %2, %c0_i32_0 : i32, i32
  }
  func.func @transform_2(%arg0: i32, %arg1: i32) -> (i32, i32, i32) {
    %c0_i32 = arith.constant 0 : i32
    %c0_i32_0 = arith.constant 0 : i32
    %c0_i32_1 = arith.constant 0 : i32
    return %arg0, %c0_i32, %c0_i32_0 : i32, i32, i32
  }
}

</mosaic_0001>

<llo_original>
// kernel: tpu_custom_call.1
$region0: #{tpu_custom_call.1}
  #allocation0 [shape = 'u32[]', space=smem, size = 0x4, offset = 0x4, fixed_abs, tag = 'smem constant byte address 0x4 - core index']
  #allocation1 [shape = 'u32[72,128]{1,0:T(1,128)}', space=vmem, size = 0x9000, scoped, tag = 'internal scratch']
  %s0 = inlined_call_operand.hbm [shape: f32[16,128], index: 0, kind: input, shape index: {}]
  %s1 = inlined_call_operand.hbm [shape: f32[16,128], index: 1, kind: input, shape index: {}]
  %s2 = inlined_call_operand.hbm [shape: f32[1,8,128], index: 2, kind: output, shape index: {}]
  %s3 = sld [smem:[#allocation0]]
  $region30: #{tpu_custom_call.1} parent=0
    _
  %s5 = ssub.s32 1, %s3
  %s6 = scalar_select 0, %s5, %s3
  $region1: #{tpu_custom_call.1} parent=0
    #allocation2 [shape = 'u8[8192]{0}', space=vmem, size = 0x2000, scoped, tag = 'input window, operand 0, single buffered']
    #allocation3 [shape = 's32[1]{0}', space=sflag, size = 0x4, scoped, tag = 'scoped memory for tpu_custom_call.1']
    #allocation4 [shape = 's32[1]{0}', space=sflag, size = 0x4, scoped, tag = 'scoped memory for tpu_custom_call.1']
    #allocation5 [shape = 'u8[8192]{0}', space=vmem, size = 0x2000, scoped, tag = 'input window, operand 1, single buffered']
    #allocation6 [shape = 's32[1]{0}', space=sflag, size = 0x4, scoped, tag = 'scoped memory for tpu_custom_call.1']
    #allocation7 [shape = 'u8[4096]{0}', space=vmem, size = 0x1000, scoped, tag = 'output window, operand 0, single buffered']
    %7 = vsyncpa [#allocation3], 0
    %8 = vsyncpa [#allocation6], 0
    %9 = vsyncpa [#allocation4], 0
    // Predicated region
    $region2: #{tpu_custom_call.1} parent=1 // pred_check
      _
    $region3: #{tpu_custom_call.1} parent=1 // pred_check_branch
      %11 = sbr.rel (0) target = $region5
    $region4: #{tpu_custom_call.1} parent=1 // pred_region
      %s12 = sadd.s32 0, 0
      %p13 = scmp.lt.s32.totalorder %s12, 0
      %s14 = scalar_select %p13, %s12, 0
      %s15 = smul.u32 2, %s14
      %17 = vsyncadd [#allocation3], 0
      %s18 = smul.addr %s15, 8
      %s19 = scalar_lea.hbm %s0, %s18
      %s20 = sshll.u32 %s19, 4
      %s21 = int_to_ptr.hbm [resolvable:$true] %s20
      %s22 = sshll.u32 [#allocation2], 4
      %s23 = int_to_ptr.vmem [resolvable:$true] %s22
      %28 = dma.hbm_to_vmem [thread:$0]  %s21, 256, %s23, [#allocation3], 128, 128, 8
    $region5: #{tpu_custom_call.1} parent=1 // pred_fallthru
      _
    // Predicated region
    $region6: #{tpu_custom_call.1} parent=1 // pred_check
      _
    $region7: #{tpu_custom_call.1} parent=1 // pred_check_branch
      %30 = sbr.rel (0) target = $region9
    $region8: #{tpu_custom_call.1} parent=1 // pred_region
      %s31 = sadd.s32 0, 0
      %p32 = scmp.lt.s32.totalorder %s31, 0
      %s33 = scalar_select %p32, %s31, 0
      %s34 = smul.u32 2, %s33
      %36 = vsyncadd [#allocation6], 0
      %s37 = smul.addr %s34, 8
      %s38 = scalar_lea.hbm %s1, %s37
      %s39 = sshll.u32 %s38, 4
      %s40 = int_to_ptr.hbm [resolvable:$true] %s39
      %s41 = sshll.u32 [#allocation5], 4
      %s42 = int_to_ptr.vmem [resolvable:$true] %s41
      %47 = dma.hbm_to_vmem [thread:$0]  %s40, 256, %s42, [#allocation6], 128, 128, 8
    $region9: #{tpu_custom_call.1} parent=1 // pred_fallthru
      _
    // Predicated region
    $region10: #{tpu_custom_call.1} parent=1 // pred_check
      _
    $region11: #{tpu_custom_call.1} parent=1 // pred_check_branch
      %49 = sbr.rel (0) target = $region13
    $region12: #{tpu_custom_call.1} parent=1 // pred_region
      %51 = dma.done [#allocation3], 256
    $region13: #{tpu_custom_call.1} parent=1 // pred_fallthru
      _
    // Predicated region
    $region14: #{tpu_custom_call.1} parent=1 // pred_check
      _
    $region15: #{tpu_custom_call.1} parent=1 // pred_check_branch
      %53 = sbr.rel (0) target = $region17
    $region16: #{tpu_custom_call.1} parent=1 // pred_region
      %55 = dma.done [#allocation6], 256
    $region17: #{tpu_custom_call.1} parent=1 // pred_fallthru
      _
    %s56 = sadd.s32 0, 0
    %p57 = scmp.lt.s32.totalorder %s56, 0
    %s58 = scalar_select %p57, %s56, 0
    %s59 = smul.u32 2, %s58
    %s60 = sadd.s32 0, 0
    %p61 = scmp.lt.s32.totalorder %s60, 0
    %s62 = scalar_select %p61, %s60, 0
    %s63 = smul.u32 2, %s62
    %p64 = scmp.eq.s32.totalorder 0, 0
    // Predicated region
    $region18: #{tpu_custom_call.1} parent=1 // pred_check
      %p65 = pneg %p64
    $region19: #{tpu_custom_call.1} parent=1 // pred_check_branch
      %67 = sbr.rel (%p65) target = $region21
    $region20: #{tpu_custom_call.1} parent=1 // pred_region
      %68 = vst [vmem:[#allocation7] sm:$0xff] 0.0
    $region21: #{tpu_custom_call.1} parent=1 // pred_fallthru
      _
    %v69 = vld [vmem:[#allocation2] sm:$0xff]
    %v70 = vld [vmem:[#allocation2 + $0x8] sm:$0xff]
    %v71 = vld [vmem:[#allocation5] sm:$0xff]
    %v72 = vld [vmem:[#allocation5 + $0x8] sm:$0xff]
    %v73 = vand.u32 2147483647, %v69
    %v74 = vand.u32 2147483647, %v70
    %v75 = vsub.f32 0.0, %v73
    %v76 = vsub.f32 0.0, %v74
    %v77 = vmul.f32 %v75, 1.442695
    %v78 = vpow.pop %v77
    %v79 = vmul.f32 %v76, 1.442695
    %v80 = vpow.pop %v79
    %v81 = vadd.f32 %v78, 1.0
    %v82 = vadd.f32 %v80, 1.0
    %v83 = vrcp.pop %v81
    %v84 = vmul.f32 %v81, %v83
    %v85 = vsub.f32 1.0, %v84
    %v86 = vmul.f32 %v83, %v85
    %v87 = vadd.f32 %v83, %v86
    %vm88 = vweird.f32 %v81
    %vm89 = vweird.f32 %v83
    %vm90 = vmor %vm88, %vm89
    %v91 = vsel %vm90, %v83, %v87
    %v92 = vand.u32 2147483647, %v81
    %vm93 = vcmp.eq.f32.partialorder %v92, 8.507059e+37
    %v94 = vand.u32 %v81, 2147483648
    %v95 = vor.u32 1.1754944e-38, %v94
    %v96 = vsel %vm93, %v95, %v91
    %v97 = vmul.f32 1.0, %v96
    %v98 = vrcp.pop %v82
    %v99 = vmul.f32 %v82, %v98
    %v100 = vsub.f32 1.0, %v99
    %v101 = vmul.f32 %v98, %v100
    %v102 = vadd.f32 %v98, %v101
    %vm103 = vweird.f32 %v82
    %vm104 = vweird.f32 %v98
    %vm105 = vmor %vm103, %vm104
    %v106 = vsel %vm105, %v98, %v102
    %v107 = vand.u32 2147483647, %v82
    %vm108 = vcmp.eq.f32.partialorder %v107, 8.507059e+37
    %v109 = vand.u32 %v82, 2147483648
    %v110 = vor.u32 1.1754944e-38, %v109
    %v111 = vsel %vm108, %v110, %v106
    %v112 = vmul.f32 1.0, %v111
    %vm113 = vcmp.ge.f32.partialorder %v69, 0.0
    %vm114 = vcmp.ge.f32.partialorder %v70, 0.0
    %v115 = vmul.f32 %v78, %v97
    %v116 = vmul.f32 %v80, %v112
    %v117 = vsel %vm113, %v97, %v115
    %v118 = vsel %vm114, %v112, %v116
    %vm119 = vcmp.eq.f32.partialorder %v71, 1.0
    %vm120 = vcmp.eq.f32.partialorder %v72, 1.0
    %v121 = vsel %vm119, 0.25, 0.75
    %v122 = vsel %vm120, 0.25, 0.75
    %v123 = vsub.f32 1.0, %v117
    %v124 = vsub.f32 1.0, %v118
    %v125 = vsel %vm119, %v117, %v123
    %v126 = vsel %vm120, %v118, %v124
    %v127 = vmax.f32 %v69, 0.0
    %v128 = vmax.f32 %v70, 0.0
    %v129 = vmul.f32 %v69, %v71
    %v130 = vmul.f32 %v70, %v72
    %v131 = vsub.f32 %v127, %v129
    %v132 = vsub.f32 %v128, %v130
    %v133 = vlog2.pop %v81
    %v134 = vmul.f32 %v133, 0.6931472
    %v135 = vlog2.pop %v82
    %v136 = vmul.f32 %v135, 0.6931472
    %v137 = vadd.f32 %v131, %v134
    %v138 = vadd.f32 %v132, %v136
    %v139 = vsub.f32 1.0, %v125
    %v140 = vsub.f32 1.0, %v126
    %v141 = vmul.f32 %v139, %v139
    %v142 = vmul.f32 %v140, %v140
    %v143 = vmul.f32 %v121, %v141
    %v144 = vmul.f32 %v122, %v142
    %v145 = vmul.f32 %v143, %v137
    %v146 = vmul.f32 %v144, %v138
    %v147 = vld [vmem:[#allocation7] sm:$0xff]
    %v148 = vadd.f32 %v145, %v146
    %v149 = vadd.f32 %v147, %v148
    %150 = vst [vmem:[#allocation7] sm:$0xff] %v149
    // Predicated region
    $region22: #{tpu_custom_call.1} parent=1 // pred_check
      _
    $region23: #{tpu_custom_call.1} parent=1 // pred_check_branch
      %152 = sbr.rel (0) target = $region25
    $region24: #{tpu_custom_call.1} parent=1 // pred_region
      %154 = vsyncadd [#allocation4], 0
      %s156 = sshll.u32 [#allocation7], 4
      %s157 = int_to_ptr.vmem [resolvable:$true] %s156
      %s158 = sshll.u32 %s2, 4
      %s159 = int_to_ptr.hbm [resolvable:$true] %s158
      %161 = dma.vmem_to_hbm [thread:$0]  %s157, 128, %s159, [#allocation4]
    $region25: #{tpu_custom_call.1} parent=1 // pred_fallthru
      _
    // Predicated region
    $region26: #{tpu_custom_call.1} parent=1 // pred_check
      _
    $region27: #{tpu_custom_call.1} parent=1 // pred_check_branch
      %163 = sbr.rel (0) target = $region29
    $region28: #{tpu_custom_call.1} parent=1 // pred_region
      %165 = dma.done [#allocation4], 128
    $region29: #{tpu_custom_call.1} parent=1 // pred_fallthru
      _
    %166 = vsyncpa [#allocation3], 1
    %167 = vsyncpa [#allocation6], 1
    %168 = vsyncpa [#allocation4], 1

</llo_original>
